<compile_context>
chip_gen: v5e
topology: v5e:2x2
jax: 0.10.0
libtpu: 0.0.40
codegen_flags: <defaults>
</compile_context>

<pallas_src>
import jax
import jax.numpy as jnp
from jax.experimental import pallas as pl
from jax.experimental.pallas import tpu as pltpu


def lstm_kernel(x_ref, wih_ref, whh_ref, bias_ref, out_ref, h_sc, c_sc, gx_sc):
    """One grid step = one (batch-block, time-chunk).  Recurrence runs in-kernel."""
    t_chunk = pl.program_id(1)
    Tc, Bb, _E = x_ref.shape
    H = h_sc.shape[1]

    @pl.when(t_chunk == 0)
    def _():
        h_sc[...] = jnp.zeros_like(h_sc)
        c_sc[...] = jnp.zeros_like(c_sc)

    # --- hoisted input projection for the whole chunk (one big MXU matmul) ---
    # (Tc, Bb, E) x (E, 4H) -> (Tc, Bb, 4H), bias added once per chunk.
    gx = jax.lax.dot_general(
        x_ref[...], wih_ref[...],
        dimension_numbers=(((2,), (0,)), ((), ())),
        preferred_element_type=jnp.float32)
    gx_sc[...] = gx + bias_ref[...]

    whh = whh_ref[...]                                   # (H, 4H), resident

    # Lane mask selecting the 'g' gate slot (gate order [i, f, g, o]); hoisted
    # out of the loop (broadcast_in_dim is not CSE'd across iterations).
    lane = jax.lax.broadcasted_iota(jnp.int32, (Bb, 4 * H), 1)
    is_g = (lane >= 2 * H) & (lane < 3 * H)

    def step(t, carry):
        h_prev, c_prev = carry
        # Only the recurrent matmul remains on the serial critical path.
        gates = gx_sc[t] + jnp.dot(h_prev, whh, preferred_element_type=jnp.float32)
        # 2 EUP activations over the full (Bb, 4H) vreg, lane-selected.
        act = jnp.where(is_g, jnp.tanh(gates), jax.nn.sigmoid(gates))
        i_g = act[:, 0 * H:1 * H]
        f_g = act[:, 1 * H:2 * H]
        g_g = act[:, 2 * H:3 * H]
        o_g = act[:, 3 * H:4 * H]
        c_new = f_g * c_prev + i_g * g_g
        h_new = o_g * jnp.tanh(c_new)
        return h_new, c_new

    h, c = jax.lax.fori_loop(0, Tc, step, (h_sc[...], c_sc[...]),
                             unroll=(Tc <= 16))
    h_sc[...] = h
    c_sc[...] = c

    @pl.when(t_chunk == pl.num_programs(1) - 1)
    def _():
        out_ref[...] = h          # final hidden state for this batch block


def sentiment_forward(tokens, embedding_matrix, w_ih, w_hh, b_ih, b_hh, w_fc, b_fc,
                      *, t_chunk=None, b_block=None):
    """tokens: (B, T) int32. Returns (B,) f32 probabilities (matches torch .squeeze())."""
    B, T = tokens.shape
    E = embedding_matrix.shape[1]
    H = w_hh.shape[1]                                    # torch w_hh is (4H, H)

    # Time-chunk / batch-block sizes.  Bb must be a multiple of 8 or == B;
    # size Tc*Bb*4H*4B (double-buffered x + gates scratch) well under the
    # scoped VMEM limit (32 MiB default; v7x physical VMEM is only 64 MiB).
    Tc = T if t_chunk is None else t_chunk
    Bb = B if b_block is None else b_block
    assert T % Tc == 0 and B % Bb == 0

    # Glue: embedding gather directly into the time-major layout (no transpose).
    x_tme = jnp.take(embedding_matrix, tokens.T, axis=0).astype(jnp.float32)  # (T, B, E)

    # Pre-transpose torch-layout weights into (in, out) for x @ W; fold biases.
    wih_t = w_ih.T.astype(jnp.float32)                   # (E, 4H)
    whh_t = w_hh.T.astype(jnp.float32)                   # (H, 4H)
    bias = (b_ih + b_hh).reshape(1, 4 * H).astype(jnp.float32)

    h_final = pl.pallas_call(
        lstm_kernel,
        out_shape=jax.ShapeDtypeStruct((B, H), jnp.float32),
        grid_spec=pltpu.PrefetchScalarGridSpec(
            num_scalar_prefetch=0,
            grid=(B // Bb, T // Tc),
            in_specs=[
                pl.BlockSpec((Tc, Bb, E), lambda b, t: (t, b, 0)),   # x chunk
                pl.BlockSpec((E, 4 * H), lambda b, t: (0, 0)),       # W_ih (resident)
                pl.BlockSpec((H, 4 * H), lambda b, t: (0, 0)),       # W_hh (resident)
                pl.BlockSpec((1, 4 * H), lambda b, t: (0, 0)),       # fused bias
            ],
            out_specs=pl.BlockSpec((Bb, H), lambda b, t: (b, 0)),    # h_T per batch block
            scratch_shapes=[
                pltpu.VMEM((Bb, H), jnp.float32),                    # h carry
                pltpu.VMEM((Bb, H), jnp.float32),                    # c carry
                pltpu.VMEM((Tc, Bb, 4 * H), jnp.float32),            # precomputed x-gates
            ],
        ),
        compiler_params=pltpu.CompilerParams(
            # batch blocks are independent (v7x megacore); time is a recurrence.
            dimension_semantics=("parallel", "arbitrary"),
        ),
    )(x_tme, wih_t, whh_t, bias)

    # dropout(0.5) is identity in eval mode; FC + sigmoid on the tiny (B,H)@(H,1)
    # runs in the wrapper (avoids a lane-width-1 masked store in the kernel).
    logits = h_final @ w_fc.T.astype(jnp.float32) + b_fc.astype(jnp.float32)
    return jax.nn.sigmoid(logits).squeeze()


def pure_jax_reference(tokens, embedding_matrix, w_ih, w_hh, b_ih, b_hh, w_fc, b_fc):
    x = jnp.take(embedding_matrix, tokens, axis=0)       # (B, T, E)
    B, T, E = x.shape
    H = w_hh.shape[1]
    h = jnp.zeros((B, H), jnp.float32)
    c = jnp.zeros((B, H), jnp.float32)
    for t in range(T):
        gates = x[:, t] @ w_ih.T + b_ih + h @ w_hh.T + b_hh
        i = jax.nn.sigmoid(gates[:, 0 * H:1 * H])
        f = jax.nn.sigmoid(gates[:, 1 * H:2 * H])
        g = jnp.tanh(gates[:, 2 * H:3 * H])
        o = jax.nn.sigmoid(gates[:, 3 * H:4 * H])
        c = f * c + i * g
        h = o * jnp.tanh(c)
    logits = h @ w_fc.T + b_fc
    return jax.nn.sigmoid(logits).squeeze()


if __name__ == "__main__":
    # Small deterministic config: vocab=50, embed=32, hidden=32, batch=8, seq=8.
    VOCAB, E, H, B, T = 50, 32, 32, 8, 8
    key = jax.random.PRNGKey(0)
    k_emb, k_tok, k_wih, k_whh, k_bih, k_bhh, k_wfc, k_bfc = jax.random.split(key, 8)

    embedding_matrix = jax.random.normal(k_emb, (VOCAB, E), jnp.float32) * 0.1
    tokens = jax.random.randint(k_tok, (B, T), 0, VOCAB, dtype=jnp.int32)

    # Torch-style parameter shapes: weight_ih_l0 (4H, E), weight_hh_l0 (4H, H), biases (4H,)
    w_ih = jax.random.normal(k_wih, (4 * H, E), jnp.float32) * 0.1
    w_hh = jax.random.normal(k_whh, (4 * H, H), jnp.float32) * 0.1
    b_ih = jax.random.normal(k_bih, (4 * H,), jnp.float32) * 0.1
    b_hh = jax.random.normal(k_bhh, (4 * H,), jnp.float32) * 0.1
    w_fc = jax.random.normal(k_wfc, (1, H), jnp.float32) * 0.1
    b_fc = jax.random.normal(k_bfc, (1,), jnp.float32) * 0.1

    out = sentiment_forward(tokens, embedding_matrix, w_ih, w_hh, b_ih, b_hh, w_fc, b_fc)
    out = jax.block_until_ready(out)

    ref = pure_jax_reference(tokens, embedding_matrix, w_ih, w_hh, b_ih, b_hh, w_fc, b_fc)
    assert out.shape == (B,), out.shape
    assert jnp.allclose(out, ref, atol=1e-5, rtol=1e-5), (out, ref)

    print("KERNEL_OK")
</pallas_src>

<mosaic_0001>
module attributes {stable_mosaic.version = 11 : i64} {
  func.func @lstm_kernel(%arg0: i32, %arg1: i32, %arg2: memref<8x8x32xf32, #tpu.memory_space<vmem>>, %arg3: memref<32x128xf32, #tpu.memory_space<vmem>>, %arg4: memref<32x128xf32, #tpu.memory_space<vmem>>, %arg5: memref<1x128xf32, #tpu.memory_space<vmem>>, %arg6: memref<8x32xf32, #tpu.memory_space<vmem>>, %arg7: memref<8x32xf32, #tpu.memory_space<vmem>>, %arg8: memref<8x32xf32, #tpu.memory_space<vmem>>, %arg9: memref<8x8x128xf32, #tpu.memory_space<vmem>>) attributes {dimension_semantics = [#tpu.dimension_semantics<parallel>, #tpu.dimension_semantics<arbitrary>], iteration_bounds = array<i64: 1, 1>, scalar_prefetch = 0 : i64, scratch_operands = 3 : i64, tpu.core_type = #tpu.core_type<tc>, window_params = [{transform_indices = @transform_0, window_bounds = array<i64: 8, 8, 32>}, {pipeline_mode = #tpu.pipeline_mode<synchronous>, transform_indices = @transform_1, window_bounds = array<i64: 32, 128>}, {pipeline_mode = #tpu.pipeline_mode<synchronous>, transform_indices = @transform_2, window_bounds = array<i64: 32, 128>}, {pipeline_mode = #tpu.pipeline_mode<synchronous>, transform_indices = @transform_3, window_bounds = array<i64: 1, 128>}, {transform_indices = @transform_4, window_bounds = array<i64: 8, 32>}]} {
    %c0_i32 = arith.constant 0 : i32
    %0 = arith.cmpi eq, %arg1, %c0_i32 : i32
    %1 = arith.extui %0 : i1 to i32
    %c0_i32_0 = arith.constant 0 : i32
    %2 = arith.cmpi ne, %1, %c0_i32_0 : i32
    scf.if %2 {
      %cst_55 = arith.constant 0.000000e+00 : f32
      %193 = vector.broadcast %cst_55 : f32 to vector<8x32xf32>
      %c0_56 = arith.constant 0 : index
      %c0_57 = arith.constant 0 : index
      %194 = vector.load %arg7[%c0_56, %c0_57] : memref<8x32xf32, #tpu.memory_space<vmem>>, vector<8x32xf32>
      tpu.vector_store %arg7[%c0_56, %c0_57], %193 {strides = array<i32>} : memref<8x32xf32, #tpu.memory_space<vmem>>, vector<8x32xf32>,
      %cst_58 = arith.constant 0.000000e+00 : f32
      %195 = vector.broadcast %cst_58 : f32 to vector<8x32xf32>
      %c0_59 = arith.constant 0 : index
      %c0_60 = arith.constant 0 : index
      %196 = vector.load %arg8[%c0_59, %c0_60] : memref<8x32xf32, #tpu.memory_space<vmem>>, vector<8x32xf32>
      tpu.vector_store %arg8[%c0_59, %c0_60], %195 {strides = array<i32>} : memref<8x32xf32, #tpu.memory_space<vmem>>, vector<8x32xf32>,
    } else {
    }
    %c0 = arith.constant 0 : index
    %c0_1 = arith.constant 0 : index
    %c0_2 = arith.constant 0 : index
    %3 = vector.load %arg2[%c0, %c0_1, %c0_2] : memref<8x8x32xf32, #tpu.memory_space<vmem>>, vector<8x8x32xf32>
    %c0_3 = arith.constant 0 : index
    %c0_4 = arith.constant 0 : index
    %4 = vector.load %arg3[%c0_3, %c0_4] : memref<32x128xf32, #tpu.memory_space<vmem>>, vector<32x128xf32>
    %cst = arith.constant dense<0.000000e+00> : vector<8x8x128xf32>
    %5 = tpu.matmul %3, %4, %cst {dimension_numbers = #tpu.dot_dimension_numbers<[2], [0], [0, 1], [1], [0, 0, 0, 1, 1, 1], [], []>} : vector<8x8x32xf32>, vector<32x128xf32>, vector<8x8x128xf32> -> vector<8x8x128xf32>
    %c0_5 = arith.constant 0 : index
    %c0_6 = arith.constant 0 : index
    %6 = vector.load %arg5[%c0_5, %c0_6] : memref<1x128xf32, #tpu.memory_space<vmem>>, vector<1x128xf32>
    %7 = vector.shape_cast %6 : vector<1x128xf32> to vector<1x1x128xf32>
    %8 = vector.broadcast %7 : vector<1x1x128xf32> to vector<8x8x128xf32>
    %9 = arith.addf %5, %8 : vector<8x8x128xf32>
    %c0_7 = arith.constant 0 : index
    %c0_8 = arith.constant 0 : index
    %c0_9 = arith.constant 0 : index
    %10 = vector.load %arg9[%c0_7, %c0_8, %c0_9] : memref<8x8x128xf32, #tpu.memory_space<vmem>>, vector<8x8x128xf32>
    tpu.vector_store %arg9[%c0_7, %c0_8, %c0_9], %9 {strides = array<i32>} : memref<8x8x128xf32, #tpu.memory_space<vmem>>, vector<8x8x128xf32>,
    %c0_10 = arith.constant 0 : index
    %c0_11 = arith.constant 0 : index
    %11 = vector.load %arg4[%c0_10, %c0_11] : memref<32x128xf32, #tpu.memory_space<vmem>>, vector<32x128xf32>
    %12 = tpu.iota {dimensions = array<i32: 1>} : vector<8x128xi32>
    %c64_i32 = arith.constant 64 : i32
    %13 = vector.broadcast %c64_i32 : i32 to vector<8x128xi32>
    %14 = arith.cmpi sge, %12, %13 : vector<8x128xi32>
    %c96_i32 = arith.constant 96 : i32
    %15 = vector.broadcast %c96_i32 : i32 to vector<8x128xi32>
    %16 = arith.cmpi slt, %12, %15 : vector<8x128xi32>
    %17 = arith.andi %14, %16 : vector<8x128xi1>
    %c0_12 = arith.constant 0 : index
    %c0_13 = arith.constant 0 : index
    %18 = vector.load %arg7[%c0_12, %c0_13] : memref<8x32xf32, #tpu.memory_space<vmem>>, vector<8x32xf32>
    %c0_14 = arith.constant 0 : index
    %c0_15 = arith.constant 0 : index
    %19 = vector.load %arg8[%c0_14, %c0_15] : memref<8x32xf32, #tpu.memory_space<vmem>>, vector<8x32xf32>
    %c0_i32_16 = arith.constant 0 : i32
    %20 = arith.index_cast %c0_i32_16 : i32 to index
    %c0_17 = arith.constant 0 : index
    %c0_18 = arith.constant 0 : index
    %21 = vector.load %arg9[%20, %c0_17, %c0_18] : memref<8x8x128xf32, #tpu.memory_space<vmem>>, vector<1x8x128xf32>
    %22 = vector.shape_cast %21 : vector<1x8x128xf32> to vector<8x128xf32>
    %cst_19 = arith.constant dense<0.000000e+00> : vector<8x128xf32>
    %23 = tpu.matmul %18, %11, %cst_19 {dimension_numbers = #tpu.dot_dimension_numbers<[1], [0], [0], [1], [0, 0, 1, 1], [], []>} : vector<8x32xf32>, vector<32x128xf32>, vector<8x128xf32> -> vector<8x128xf32>
    %24 = arith.addf %22, %23 : vector<8x128xf32>
    %25 = math.tanh %24 : vector<8x128xf32>
    %26 = arith.negf %24 : vector<8x128xf32>
    %27 = math.exp %26 : vector<8x128xf32>
    %cst_20 = arith.constant 1.000000e+00 : f32
    %28 = vector.broadcast %cst_20 : f32 to vector<8x128xf32>
    %29 = arith.addf %28, %27 : vector<8x128xf32>
    %30 = arith.divf %28, %29 : vector<8x128xf32>
    %31 = arith.select %17, %25, %30 : vector<8x128xi1>, vector<8x128xf32>
    %32 = vector.extract_strided_slice %31 {offsets = [0, 0], sizes = [8, 32], strides = [1, 1]} : vector<8x128xf32> to vector<8x32xf32>
    %33 = vector.extract_strided_slice %31 {offsets = [0, 32], sizes = [8, 32], strides = [1, 1]} : vector<8x128xf32> to vector<8x32xf32>
    %34 = vector.extract_strided_slice %31 {offsets = [0, 64], sizes = [8, 32], strides = [1, 1]} : vector<8x128xf32> to vector<8x32xf32>
    %35 = vector.extract_strided_slice %31 {offsets = [0, 96], sizes = [8, 32], strides = [1, 1]} : vector<8x128xf32> to vector<8x32xf32>
    %36 = arith.mulf %33, %19 : vector<8x32xf32>
    %37 = arith.mulf %32, %34 : vector<8x32xf32>
    %38 = arith.addf %36, %37 : vector<8x32xf32>
    %39 = math.tanh %38 : vector<8x32xf32>
    %40 = arith.mulf %35, %39 : vector<8x32xf32>
    %c1_i32 = arith.constant 1 : i32
    %41 = arith.index_cast %c1_i32 : i32 to index
    %c0_21 = arith.constant 0 : index
    %c0_22 = arith.constant 0 : index
    %42 = vector.load %arg9[%41, %c0_21, %c0_22] : memref<8x8x128xf32, #tpu.memory_space<vmem>>, vector<1x8x128xf32>
    %43 = vector.shape_cast %42 : vector<1x8x128xf32> to vector<8x128xf32>
    %cst_23 = arith.constant dense<0.000000e+00> : vector<8x128xf32>
    %44 = tpu.matmul %40, %11, %cst_23 {dimension_numbers = #tpu.dot_dimension_numbers<[1], [0], [0], [1], [0, 0, 1, 1], [], []>} : vector<8x32xf32>, vector<32x128xf32>, vector<8x128xf32> -> vector<8x128xf32>
    %45 = arith.addf %43, %44 : vector<8x128xf32>
    %46 = math.tanh %45 : vector<8x128xf32>
    %47 = arith.negf %45 : vector<8x128xf32>
    %48 = math.exp %47 : vector<8x128xf32>
    %cst_24 = arith.constant 1.000000e+00 : f32
    %49 = vector.broadcast %cst_24 : f32 to vector<8x128xf32>
    %50 = arith.addf %49, %48 : vector<8x128xf32>
    %51 = arith.divf %49, %50 : vector<8x128xf32>
    %52 = arith.select %17, %46, %51 : vector<8x128xi1>, vector<8x128xf32>
    %53 = vector.extract_strided_slice %52 {offsets = [0, 0], sizes = [8, 32], strides = [1, 1]} : vector<8x128xf32> to vector<8x32xf32>
    %54 = vector.extract_strided_slice %52 {offsets = [0, 32], sizes = [8, 32], strides = [1, 1]} : vector<8x128xf32> to vector<8x32xf32>
    %55 = vector.extract_strided_slice %52 {offsets = [0, 64], sizes = [8, 32], strides = [1, 1]} : vector<8x128xf32> to vector<8x32xf32>
    %56 = vector.extract_strided_slice %52 {offsets = [0, 96], sizes = [8, 32], strides = [1, 1]} : vector<8x128xf32> to vector<8x32xf32>
    %57 = arith.mulf %54, %38 : vector<8x32xf32>
    %58 = arith.mulf %53, %55 : vector<8x32xf32>
    %59 = arith.addf %57, %58 : vector<8x32xf32>
    %60 = math.tanh %59 : vector<8x32xf32>
    %61 = arith.mulf %56, %60 : vector<8x32xf32>
    %c2_i32 = arith.constant 2 : i32
    %62 = arith.index_cast %c2_i32 : i32 to index
    %c0_25 = arith.constant 0 : index
    %c0_26 = arith.constant 0 : index
    %63 = vector.load %arg9[%62, %c0_25, %c0_26] : memref<8x8x128xf32, #tpu.memory_space<vmem>>, vector<1x8x128xf32>
    %64 = vector.shape_cast %63 : vector<1x8x128xf32> to vector<8x128xf32>
    %cst_27 = arith.constant dense<0.000000e+00> : vector<8x128xf32>
    %65 = tpu.matmul %61, %11, %cst_27 {dimension_numbers = #tpu.dot_dimension_numbers<[1], [0], [0], [1], [0, 0, 1, 1], [], []>} : vector<8x32xf32>, vector<32x128xf32>, vector<8x128xf32> -> vector<8x128xf32>
    %66 = arith.addf %64, %65 : vector<8x128xf32>
    %67 = math.tanh %66 : vector<8x128xf32>
    %68 = arith.negf %66 : vector<8x128xf32>
    %69 = math.exp %68 : vector<8x128xf32>
    %cst_28 = arith.constant 1.000000e+00 : f32
    %70 = vector.broadcast %cst_28 : f32 to vector<8x128xf32>
    %71 = arith.addf %70, %69 : vector<8x128xf32>
    %72 = arith.divf %70, %71 : vector<8x128xf32>
    %73 = arith.select %17, %67, %72 : vector<8x128xi1>, vector<8x128xf32>
    %74 = vector.extract_strided_slice %73 {offsets = [0, 0], sizes = [8, 32], strides = [1, 1]} : vector<8x128xf32> to vector<8x32xf32>
    %75 = vector.extract_strided_slice %73 {offsets = [0, 32], sizes = [8, 32], strides = [1, 1]} : vector<8x128xf32> to vector<8x32xf32>
    %76 = vector.extract_strided_slice %73 {offsets = [0, 64], sizes = [8, 32], strides = [1, 1]} : vector<8x128xf32> to vector<8x32xf32>
    %77 = vector.extract_strided_slice %73 {offsets = [0, 96], sizes = [8, 32], strides = [1, 1]} : vector<8x128xf32> to vector<8x32xf32>
    %78 = arith.mulf %75, %59 : vector<8x32xf32>
    %79 = arith.mulf %74, %76 : vector<8x32xf32>
    %80 = arith.addf %78, %79 : vector<8x32xf32>
    %81 = math.tanh %80 : vector<8x32xf32>
    %82 = arith.mulf %77, %81 : vector<8x32xf32>
    %c3_i32 = arith.constant 3 : i32
    %83 = arith.index_cast %c3_i32 : i32 to index
    %c0_29 = arith.constant 0 : index
    %c0_30 = arith.constant 0 : index
    %84 = vector.load %arg9[%83, %c0_29, %c0_30] : memref<8x8x128xf32, #tpu.memory_space<vmem>>, vector<1x8x128xf32>
    %85 = vector.shape_cast %84 : vector<1x8x128xf32> to vector<8x128xf32>
    %cst_31 = arith.constant dense<0.000000e+00> : vector<8x128xf32>
    %86 = tpu.matmul %82, %11, %cst_31 {dimension_numbers = #tpu.dot_dimension_numbers<[1], [0], [0], [1], [0, 0, 1, 1], [], []>} : vector<8x32xf32>, vector<32x128xf32>, vector<8x128xf32> -> vector<8x128xf32>
    %87 = arith.addf %85, %86 : vector<8x128xf32>
    %88 = math.tanh %87 : vector<8x128xf32>
    %89 = arith.negf %87 : vector<8x128xf32>
    %90 = math.exp %89 : vector<8x128xf32>
    %cst_32 = arith.constant 1.000000e+00 : f32
    %91 = vector.broadcast %cst_32 : f32 to vector<8x128xf32>
    %92 = arith.addf %91, %90 : vector<8x128xf32>
    %93 = arith.divf %91, %92 : vector<8x128xf32>
    %94 = arith.select %17, %88, %93 : vector<8x128xi1>, vector<8x128xf32>
    %95 = vector.extract_strided_slice %94 {offsets = [0, 0], sizes = [8, 32], strides = [1, 1]} : vector<8x128xf32> to vector<8x32xf32>
    %96 = vector.extract_strided_slice %94 {offsets = [0, 32], sizes = [8, 32], strides = [1, 1]} : vector<8x128xf32> to vector<8x32xf32>
    %97 = vector.extract_strided_slice %94 {offsets = [0, 64], sizes = [8, 32], strides = [1, 1]} : vector<8x128xf32> to vector<8x32xf32>
    %98 = vector.extract_strided_slice %94 {offsets = [0, 96], sizes = [8, 32], strides = [1, 1]} : vector<8x128xf32> to vector<8x32xf32>
    %99 = arith.mulf %96, %80 : vector<8x32xf32>
    %100 = arith.mulf %95, %97 : vector<8x32xf32>
    %101 = arith.addf %99, %100 : vector<8x32xf32>
    %102 = math.tanh %101 : vector<8x32xf32>
    %103 = arith.mulf %98, %102 : vector<8x32xf32>
    %c4_i32 = arith.constant 4 : i32
    %104 = arith.index_cast %c4_i32 : i32 to index
    %c0_33 = arith.constant 0 : index
    %c0_34 = arith.constant 0 : index
    %105 = vector.load %arg9[%104, %c0_33, %c0_34] : memref<8x8x128xf32, #tpu.memory_space<vmem>>, vector<1x8x128xf32>
    %106 = vector.shape_cast %105 : vector<1x8x128xf32> to vector<8x128xf32>
    %cst_35 = arith.constant dense<0.000000e+00> : vector<8x128xf32>
    %107 = tpu.matmul %103, %11, %cst_35 {dimension_numbers = #tpu.dot_dimension_numbers<[1], [0], [0], [1], [0, 0, 1, 1], [], []>} : vector<8x32xf32>, vector<32x128xf32>, vector<8x128xf32> -> vector<8x128xf32>
    %108 = arith.addf %106, %107 : vector<8x128xf32>
    %109 = math.tanh %108 : vector<8x128xf32>
    %110 = arith.negf %108 : vector<8x128xf32>
    %111 = math.exp %110 : vector<8x128xf32>
    %cst_36 = arith.constant 1.000000e+00 : f32
    %112 = vector.broadcast %cst_36 : f32 to vector<8x128xf32>
    %113 = arith.addf %112, %111 : vector<8x128xf32>
    %114 = arith.divf %112, %113 : vector<8x128xf32>
    %115 = arith.select %17, %109, %114 : vector<8x128xi1>, vector<8x128xf32>
    %116 = vector.extract_strided_slice %115 {offsets = [0, 0], sizes = [8, 32], strides = [1, 1]} : vector<8x128xf32> to vector<8x32xf32>
    %117 = vector.extract_strided_slice %115 {offsets = [0, 32], sizes = [8, 32], strides = [1, 1]} : vector<8x128xf32> to vector<8x32xf32>
    %118 = vector.extract_strided_slice %115 {offsets = [0, 64], sizes = [8, 32], strides = [1, 1]} : vector<8x128xf32> to vector<8x32xf32>
    %119 = vector.extract_strided_slice %115 {offsets = [0, 96], sizes = [8, 32], strides = [1, 1]} : vector<8x128xf32> to vector<8x32xf32>
    %120 = arith.mulf %117, %101 : vector<8x32xf32>
    %121 = arith.mulf %116, %118 : vector<8x32xf32>
    %122 = arith.addf %120, %121 : vector<8x32xf32>
    %123 = math.tanh %122 : vector<8x32xf32>
    %124 = arith.mulf %119, %123 : vector<8x32xf32>
    %c5_i32 = arith.constant 5 : i32
    %125 = arith.index_cast %c5_i32 : i32 to index
    %c0_37 = arith.constant 0 : index
    %c0_38 = arith.constant 0 : index
    %126 = vector.load %arg9[%125, %c0_37, %c0_38] : memref<8x8x128xf32, #tpu.memory_space<vmem>>, vector<1x8x128xf32>
    %127 = vector.shape_cast %126 : vector<1x8x128xf32> to vector<8x128xf32>
    %cst_39 = arith.constant dense<0.000000e+00> : vector<8x128xf32>
    %128 = tpu.matmul %124, %11, %cst_39 {dimension_numbers = #tpu.dot_dimension_numbers<[1], [0], [0], [1], [0, 0, 1, 1], [], []>} : vector<8x32xf32>, vector<32x128xf32>, vector<8x128xf32> -> vector<8x128xf32>
    %129 = arith.addf %127, %128 : vector<8x128xf32>
    %130 = math.tanh %129 : vector<8x128xf32>
    %131 = arith.negf %129 : vector<8x128xf32>
    %132 = math.exp %131 : vector<8x128xf32>
    %cst_40 = arith.constant 1.000000e+00 : f32
    %133 = vector.broadcast %cst_40 : f32 to vector<8x128xf32>
    %134 = arith.addf %133, %132 : vector<8x128xf32>
    %135 = arith.divf %133, %134 : vector<8x128xf32>
    %136 = arith.select %17, %130, %135 : vector<8x128xi1>, vector<8x128xf32>
    %137 = vector.extract_strided_slice %136 {offsets = [0, 0], sizes = [8, 32], strides = [1, 1]} : vector<8x128xf32> to vector<8x32xf32>
    %138 = vector.extract_strided_slice %136 {offsets = [0, 32], sizes = [8, 32], strides = [1, 1]} : vector<8x128xf32> to vector<8x32xf32>
    %139 = vector.extract_strided_slice %136 {offsets = [0, 64], sizes = [8, 32], strides = [1, 1]} : vector<8x128xf32> to vector<8x32xf32>
    %140 = vector.extract_strided_slice %136 {offsets = [0, 96], sizes = [8, 32], strides = [1, 1]} : vector<8x128xf32> to vector<8x32xf32>
    %141 = arith.mulf %138, %122 : vector<8x32xf32>
    %142 = arith.mulf %137, %139 : vector<8x32xf32>
    %143 = arith.addf %141, %142 : vector<8x32xf32>
    %144 = math.tanh %143 : vector<8x32xf32>
    %145 = arith.mulf %140, %144 : vector<8x32xf32>
    %c6_i32 = arith.constant 6 : i32
    %146 = arith.index_cast %c6_i32 : i32 to index
    %c0_41 = arith.constant 0 : index
    %c0_42 = arith.constant 0 : index
    %147 = vector.load %arg9[%146, %c0_41, %c0_42] : memref<8x8x128xf32, #tpu.memory_space<vmem>>, vector<1x8x128xf32>
    %148 = vector.shape_cast %147 : vector<1x8x128xf32> to vector<8x128xf32>
    %cst_43 = arith.constant dense<0.000000e+00> : vector<8x128xf32>
    %149 = tpu.matmul %145, %11, %cst_43 {dimension_numbers = #tpu.dot_dimension_numbers<[1], [0], [0], [1], [0, 0, 1, 1], [], []>} : vector<8x32xf32>, vector<32x128xf32>, vector<8x128xf32> -> vector<8x128xf32>
    %150 = arith.addf %148, %149 : vector<8x128xf32>
    %151 = math.tanh %150 : vector<8x128xf32>
    %152 = arith.negf %150 : vector<8x128xf32>
    %153 = math.exp %152 : vector<8x128xf32>
    %cst_44 = arith.constant 1.000000e+00 : f32
    %154 = vector.broadcast %cst_44 : f32 to vector<8x128xf32>
    %155 = arith.addf %154, %153 : vector<8x128xf32>
    %156 = arith.divf %154, %155 : vector<8x128xf32>
    %157 = arith.select %17, %151, %156 : vector<8x128xi1>, vector<8x128xf32>
    %158 = vector.extract_strided_slice %157 {offsets = [0, 0], sizes = [8, 32], strides = [1, 1]} : vector<8x128xf32> to vector<8x32xf32>
    %159 = vector.extract_strided_slice %157 {offsets = [0, 32], sizes = [8, 32], strides = [1, 1]} : vector<8x128xf32> to vector<8x32xf32>
    %160 = vector.extract_strided_slice %157 {offsets = [0, 64], sizes = [8, 32], strides = [1, 1]} : vector<8x128xf32> to vector<8x32xf32>
    %161 = vector.extract_strided_slice %157 {offsets = [0, 96], sizes = [8, 32], strides = [1, 1]} : vector<8x128xf32> to vector<8x32xf32>
    %162 = arith.mulf %159, %143 : vector<8x32xf32>
    %163 = arith.mulf %158, %160 : vector<8x32xf32>
    %164 = arith.addf %162, %163 : vector<8x32xf32>
    %165 = math.tanh %164 : vector<8x32xf32>
    %166 = arith.mulf %161, %165 : vector<8x32xf32>
    %c7_i32 = arith.constant 7 : i32
    %167 = arith.index_cast %c7_i32 : i32 to index
    %c0_45 = arith.constant 0 : index
    %c0_46 = arith.constant 0 : index
    %168 = vector.load %arg9[%167, %c0_45, %c0_46] : memref<8x8x128xf32, #tpu.memory_space<vmem>>, vector<1x8x128xf32>
    %169 = vector.shape_cast %168 : vector<1x8x128xf32> to vector<8x128xf32>
    %cst_47 = arith.constant dense<0.000000e+00> : vector<8x128xf32>
    %170 = tpu.matmul %166, %11, %cst_47 {dimension_numbers = #tpu.dot_dimension_numbers<[1], [0], [0], [1], [0, 0, 1, 1], [], []>} : vector<8x32xf32>, vector<32x128xf32>, vector<8x128xf32> -> vector<8x128xf32>
    %171 = arith.addf %169, %170 : vector<8x128xf32>
    %172 = math.tanh %171 : vector<8x128xf32>
    %173 = arith.negf %171 : vector<8x128xf32>
    %174 = math.exp %173 : vector<8x128xf32>
    %cst_48 = arith.constant 1.000000e+00 : f32
    %175 = vector.broadcast %cst_48 : f32 to vector<8x128xf32>
    %176 = arith.addf %175, %174 : vector<8x128xf32>
    %177 = arith.divf %175, %176 : vector<8x128xf32>
    %178 = arith.select %17, %172, %177 : vector<8x128xi1>, vector<8x128xf32>
    %179 = vector.extract_strided_slice %178 {offsets = [0, 0], sizes = [8, 32], strides = [1, 1]} : vector<8x128xf32> to vector<8x32xf32>
    %180 = vector.extract_strided_slice %178 {offsets = [0, 32], sizes = [8, 32], strides = [1, 1]} : vector<8x128xf32> to vector<8x32xf32>
    %181 = vector.extract_strided_slice %178 {offsets = [0, 64], sizes = [8, 32], strides = [1, 1]} : vector<8x128xf32> to vector<8x32xf32>
    %182 = vector.extract_strided_slice %178 {offsets = [0, 96], sizes = [8, 32], strides = [1, 1]} : vector<8x128xf32> to vector<8x32xf32>
    %183 = arith.mulf %180, %164 : vector<8x32xf32>
    %184 = arith.mulf %179, %181 : vector<8x32xf32>
    %185 = arith.addf %183, %184 : vector<8x32xf32>
    %186 = math.tanh %185 : vector<8x32xf32>
    %187 = arith.mulf %182, %186 : vector<8x32xf32>
    %c8_i32 = arith.constant 8 : i32
    %c0_49 = arith.constant 0 : index
    %c0_50 = arith.constant 0 : index
    %188 = vector.load %arg7[%c0_49, %c0_50] : memref<8x32xf32, #tpu.memory_space<vmem>>, vector<8x32xf32>
    tpu.vector_store %arg7[%c0_49, %c0_50], %187 {strides = array<i32>} : memref<8x32xf32, #tpu.memory_space<vmem>>, vector<8x32xf32>,
    %c0_51 = arith.constant 0 : index
    %c0_52 = arith.constant 0 : index
    %189 = vector.load %arg8[%c0_51, %c0_52] : memref<8x32xf32, #tpu.memory_space<vmem>>, vector<8x32xf32>
    tpu.vector_store %arg8[%c0_51, %c0_52], %185 {strides = array<i32>} : memref<8x32xf32, #tpu.memory_space<vmem>>, vector<8x32xf32>,
    %c0_i32_53 = arith.constant 0 : i32
    %190 = arith.cmpi eq, %arg1, %c0_i32_53 : i32
    %191 = arith.extui %190 : i1 to i32
    %c0_i32_54 = arith.constant 0 : i32
    %192 = arith.cmpi ne, %191, %c0_i32_54 : i32
    scf.if %192 {
      %c0_55 = arith.constant 0 : index
      %c0_56 = arith.constant 0 : index
      %193 = vector.load %arg6[%c0_55, %c0_56] : memref<8x32xf32, #tpu.memory_space<vmem>>, vector<8x32xf32>
      tpu.vector_store %arg6[%c0_55, %c0_56], %187 {strides = array<i32>} : memref<8x32xf32, #tpu.memory_space<vmem>>, vector<8x32xf32>,
    } else {
    }
    return
  }
  func.func @transform_0(%arg0: i32, %arg1: i32) -> (i32, i32, i32) {
    %c0_i32 = arith.constant 0 : i32
    %c0_i32_0 = arith.constant 0 : i32
    return %arg1, %arg0, %c0_i32 : i32, i32, i32
  }
  func.func @transform_1(%arg0: i32, %arg1: i32) -> (i32, i32) {
    %c0_i32 = arith.constant 0 : i32
    %c0_i32_0 = arith.constant 0 : i32
    %c0_i32_1 = arith.constant 0 : i32
    return %c0_i32, %c0_i32_0 : i32, i32
  }
  func.func @transform_2(%arg0: i32, %arg1: i32) -> (i32, i32) {
    %c0_i32 = arith.constant 0 : i32
    %c0_i32_0 = arith.constant 0 : i32
    %c0_i32_1 = arith.constant 0 : i32
    return %c0_i32, %c0_i32_0 : i32, i32
  }
  func.func @transform_3(%arg0: i32, %arg1: i32) -> (i32, i32) {
    %c0_i32 = arith.constant 0 : i32
    %c0_i32_0 = arith.constant 0 : i32
    %c0_i32_1 = arith.constant 0 : i32
    return %c0_i32, %c0_i32_0 : i32, i32
  }
  func.func @transform_4(%arg0: i32, %arg1: i32) -> (i32, i32) {
    %c0_i32 = arith.constant 0 : i32
    %c0_i32_0 = arith.constant 0 : i32
    return %arg0, %c0_i32 : i32, i32
  }
}

</mosaic_0001>

<llo_original>
// kernel: tpu_custom_call.1
$region0: #{tpu_custom_call.1}
  #allocation0 [shape = 'u32[]', space=smem, size = 0x4, offset = 0x4, fixed_abs, tag = 'smem constant byte address 0x4 - core index']
  #allocation1 [shape = 'u32[72,128]{1,0:T(1,128)}', space=vmem, size = 0x9000, scoped, tag = 'internal scratch']
  #allocation2 [shape = 'f32[8,32]{1,0:T(8,128)}', space=vmem, size = 0x1000, scoped, tag = 'scratch operand']
  #allocation3 [shape = 'f32[8,32]{1,0:T(8,128)}', space=vmem, size = 0x1000, scoped, tag = 'scratch operand']
  #allocation4 [shape = 'f32[8,8,128]{2,1,0:T(8,128)}', space=vmem, size = 0x8000, scoped, tag = 'scratch operand']
  %s0 = inlined_call_operand.hbm [shape: f32[8,8,32], index: 0, kind: input, shape index: {}]
  %s1 = inlined_call_operand.hbm [shape: f32[32,128], index: 1, kind: input, shape index: {}]
  %s2 = inlined_call_operand.hbm [shape: f32[32,128], index: 2, kind: input, shape index: {}]
  %s3 = inlined_call_operand.vmem [shape: f32[1,128], index: 3, kind: input, shape index: {}]
  %s4 = inlined_call_operand.hbm [shape: f32[8,32], index: 4, kind: output, shape index: {}]
  %s5 = sld [smem:[#allocation0]]
  $region46: #{tpu_custom_call.1} parent=0
    _
  %s7 = ssub.s32 1, %s5
  %s8 = scalar_select 0, %s7, %s5
  $region1: #{tpu_custom_call.1} parent=0
    #allocation5 [shape = 'u8[32768]{0}', space=vmem, size = 0x8000, scoped, tag = 'input window, operand 0, single buffered']
    #allocation6 [shape = 's32[1]{0}', space=sflag, size = 0x4, scoped, tag = 'scoped memory for tpu_custom_call.1']
    #allocation7 [shape = 's32[1]{0}', space=sflag, size = 0x4, scoped, tag = 'scoped memory for tpu_custom_call.1']
    #allocation8 [shape = 'u8[16384]{0}', space=vmem, size = 0x4000, scoped, tag = 'input window, operand 1, single buffered']
    #allocation9 [shape = 's32[1]{0}', space=sflag, size = 0x4, scoped, tag = 'scoped memory for tpu_custom_call.1']
    #allocation10 [shape = 'u8[16384]{0}', space=vmem, size = 0x4000, scoped, tag = 'input window, operand 2, single buffered']
    #allocation11 [shape = 'u8[4096]{0}', space=vmem, size = 0x1000, scoped, tag = 'output window, operand 0, single buffered']
    %9 = vsyncpa [#allocation6], 0
    %10 = vsyncpa [#allocation9], 0
    %11 = vsyncpa [#allocation7], 0
    // Predicated region
    $region2: #{tpu_custom_call.1} parent=1 // pred_check
      _
    $region3: #{tpu_custom_call.1} parent=1 // pred_check_branch
      %13 = sbr.rel (0) target = $region5
    $region4: #{tpu_custom_call.1} parent=1 // pred_region
      %15 = vsyncadd [#allocation6], 0
      %s16 = sshll.u32 %s0, 4
      %s17 = int_to_ptr.hbm [resolvable:$true] %s16
      %s18 = sshll.u32 [#allocation5], 4
      %s19 = int_to_ptr.vmem [resolvable:$true] %s18
      %24 = dma.hbm_to_vmem [thread:$0]  %s17, 1024, %s19, [#allocation6], 128, 128, 8
    $region5: #{tpu_custom_call.1} parent=1 // pred_fallthru
      _
    // Predicated region
    $region6: #{tpu_custom_call.1} parent=1 // pred_check
      _
    $region7: #{tpu_custom_call.1} parent=1 // pred_check_branch
      %26 = sbr.rel (0) target = $region9
    $region8: #{tpu_custom_call.1} parent=1 // pred_region
      %28 = vsyncadd [#allocation9], 0
      %s29 = sshll.u32 %s1, 4
      %s30 = int_to_ptr.hbm [resolvable:$true] %s29
      %s31 = sshll.u32 [#allocation8], 4
      %s32 = int_to_ptr.vmem [resolvable:$true] %s31
      %37 = dma.hbm_to_vmem [thread:$0]  %s30, 512, %s32, [#allocation9], 128, 128, 8
    $region9: #{tpu_custom_call.1} parent=1 // pred_fallthru
      _
    // Predicated region
    $region10: #{tpu_custom_call.1} parent=1 // pred_check
      _
    $region11: #{tpu_custom_call.1} parent=1 // pred_check_branch
      %39 = sbr.rel (0) target = $region13
    $region12: #{tpu_custom_call.1} parent=1 // pred_region
      %41 = vsyncadd [#allocation9], 0
      %s42 = sshll.u32 %s2, 4
      %s43 = int_to_ptr.hbm [resolvable:$true] %s42
      %s44 = sshll.u32 [#allocation10], 4
      %s45 = int_to_ptr.vmem [resolvable:$true] %s44
      %50 = dma.hbm_to_vmem [thread:$0]  %s43, 512, %s45, [#allocation9], 128, 128, 8
    $region13: #{tpu_custom_call.1} parent=1 // pred_fallthru
      _
    // Predicated region
    $region14: #{tpu_custom_call.1} parent=1 // pred_check
      _
    $region15: #{tpu_custom_call.1} parent=1 // pred_check_branch
      %52 = sbr.rel (0) target = $region17
    $region16: #{tpu_custom_call.1} parent=1 // pred_region
      _
    $region17: #{tpu_custom_call.1} parent=1 // pred_fallthru
      _
    // Predicated region
    $region18: #{tpu_custom_call.1} parent=1 // pred_check
      _
    $region19: #{tpu_custom_call.1} parent=1 // pred_check_branch
      %54 = sbr.rel (0) target = $region21
    $region20: #{tpu_custom_call.1} parent=1 // pred_region
      %56 = dma.done [#allocation6], 1024
    $region21: #{tpu_custom_call.1} parent=1 // pred_fallthru
      _
    // Predicated region
    $region22: #{tpu_custom_call.1} parent=1 // pred_check
      _
    $region23: #{tpu_custom_call.1} parent=1 // pred_check_branch
      %58 = sbr.rel (0) target = $region25
    $region24: #{tpu_custom_call.1} parent=1 // pred_region
      %60 = dma.done [#allocation9], 512
    $region25: #{tpu_custom_call.1} parent=1 // pred_fallthru
      _
    // Predicated region
    $region26: #{tpu_custom_call.1} parent=1 // pred_check
      _
    $region27: #{tpu_custom_call.1} parent=1 // pred_check_branch
      %62 = sbr.rel (0) target = $region29
    $region28: #{tpu_custom_call.1} parent=1 // pred_region
      %64 = dma.done [#allocation9], 512
    $region29: #{tpu_custom_call.1} parent=1 // pred_fallthru
      _
    %p65 = scmp.eq.s32.totalorder 0, 0
    // Predicated region
    $region30: #{tpu_custom_call.1} parent=1 // pred_check
      %p66 = pneg %p65
    $region31: #{tpu_custom_call.1} parent=1 // pred_check_branch
      %68 = sbr.rel (%p66) target = $region33
    $region32: #{tpu_custom_call.1} parent=1 // pred_region
      %vm69 = vcmask 261120
      %70 = vst.msk [vmem:[#allocation2] sm:$0xff] %vm69, 0.0
      %71 = vst.msk [vmem:[#allocation3] sm:$0xff] %vm69, 0.0
    $region33: #{tpu_custom_call.1} parent=1 // pred_fallthru
      _
    %v72 = vld [vmem:[#allocation5] sm:$0xff]
    %v73 = vld [vmem:[#allocation5 + $0x8] sm:$0xff]
    %v74 = vld [vmem:[#allocation5 + $0x10] sm:$0xff]
    %v75 = vld [vmem:[#allocation5 + $0x18] sm:$0xff]
    %v76 = vld [vmem:[#allocation5 + $0x20] sm:$0xff]
    %v77 = vld [vmem:[#allocation5 + $0x28] sm:$0xff]
    %v78 = vld [vmem:[#allocation5 + $0x30] sm:$0xff]
    %v79 = vld [vmem:[#allocation5 + $0x38] sm:$0xff]
    %v80 = vld [vmem:[#allocation8] sm:$0xff]
    %v81 = vld [vmem:[#allocation8 + $0x8] sm:$0xff]
    %v82 = vld [vmem:[#allocation8 + $0x10] sm:$0xff]
    %v83 = vld [vmem:[#allocation8 + $0x18] sm:$0xff]
    %v84 = vld [vmem:[%s3] sm:$0x1]
    %v86 = vperm.slane %v84, 0
    %vm88 = vcmask 261120
    %v90 = vsel %vm88, %v72, 0
    %v93 = vsel %vm88, %v73, 0
    %v96 = vsel %vm88, %v74, 0
    %v99 = vsel %vm88, %v75, 0
    %v102 = vsel %vm88, %v76, 0
    %v105 = vsel %vm88, %v77, 0
    %v108 = vsel %vm88, %v78, 0
    %v111 = vsel %vm88, %v79, 0
    %113 = vmatpush.msra.mxu0 0.0
    %114 = vmatpush.msra.mxu0 0.0
    %115 = vmatpush.msra.mxu0 0.0
    %116 = vmatpush.msra.mxu0 0.0
    %117 = vmatpush.msra.mxu0 0.0
    %118 = vmatpush.msra.mxu0 0.0
    %119 = vmatpush.msra.mxu0 0.0
    %120 = vmatpush.msra.mxu0 0.0
    %121 = vmatpush.msra.mxu0 0.0
    %122 = vmatpush.msra.mxu0 0.0
    %123 = vmatpush.msra.mxu0 0.0
    %124 = vmatpush.msra.mxu0 0.0
    %125 = vmatpush.msra.mxu0 %v83
    %126 = vmatpush.msra.mxu0 %v82
    %127 = vmatpush.msra.mxu0 %v81
    %128 = vmatpush.msra.mxu0 %v80
    %129 = vmatmul.f32.gmra.mxu0 %v90
    %v130 = vpop.f32.mrf.mxu0
    %v131 = vadd.f32 %v86, %v130
    %132 = vmatmul.f32.gmra.mxu0 %v93
    %v133 = vpop.f32.mrf.mxu0
    %v134 = vadd.f32 %v86, %v133
    %135 = vmatmul.f32.gmra.mxu0 %v96
    %v136 = vpop.f32.mrf.mxu0
    %v137 = vadd.f32 %v86, %v136
    %138 = vmatmul.f32.gmra.mxu0 %v99
    %v139 = vpop.f32.mrf.mxu0
    %v140 = vadd.f32 %v86, %v139
    %141 = vmatmul.f32.gmra.mxu0 %v102
    %v142 = vpop.f32.mrf.mxu0
    %v143 = vadd.f32 %v86, %v142
    %144 = vmatmul.f32.gmra.mxu0 %v105
    %v145 = vpop.f32.mrf.mxu0
    %v146 = vadd.f32 %v86, %v145
    %147 = vmatmul.f32.gmra.mxu0 %v108
    %v148 = vpop.f32.mrf.mxu0
    %v149 = vadd.f32 %v86, %v148
    %150 = vmatmul.f32.gmra.mxu0 %v111
    %v151 = vpop.f32.mrf.mxu0
    %v152 = vadd.f32 %v86, %v151
    %153 = vdwg.mxu0
    %154 = vst [vmem:[#allocation4] sm:$0xff] %v131
    %155 = vst [vmem:[#allocation4 + $0x8] sm:$0xff] %v134
    %156 = vst [vmem:[#allocation4 + $0x10] sm:$0xff] %v137
    %157 = vst [vmem:[#allocation4 + $0x18] sm:$0xff] %v140
    %158 = vst [vmem:[#allocation4 + $0x20] sm:$0xff] %v143
    %159 = vst [vmem:[#allocation4 + $0x28] sm:$0xff] %v146
    %160 = vst [vmem:[#allocation4 + $0x30] sm:$0xff] %v149
    %161 = vst [vmem:[#allocation4 + $0x38] sm:$0xff] %v152
    %v162 = vld [vmem:[#allocation10] sm:$0xff]
    %v163 = vld [vmem:[#allocation10 + $0x8] sm:$0xff]
    %v164 = vld [vmem:[#allocation10 + $0x10] sm:$0xff]
    %v165 = vld [vmem:[#allocation10 + $0x18] sm:$0xff]
    %v166 = vlaneseq
    %v167 = vand.u32 %v166, 127
    %vm168 = vcmp.ge.s32.totalorder %v167, 64
    %vm169 = vcmp.lt.s32.totalorder %v167, 96
    %vm170 = vmand %vm168, %vm169
    %v171 = vld [vmem:[#allocation2] sm:$0xff]
    %v172 = vld [vmem:[#allocation3] sm:$0xff]
    %v173 = vld [vmem:[#allocation4] sm:$0xff]
    %v175 = vsel %vm88, %v171, 0
    %177 = vmatpush.msra.mxu0 0.0
    %178 = vmatpush.msra.mxu0 0.0
    %179 = vmatpush.msra.mxu0 0.0
    %180 = vmatpush.msra.mxu0 0.0
    %181 = vmatpush.msra.mxu0 0.0
    %182 = vmatpush.msra.mxu0 0.0
    %183 = vmatpush.msra.mxu0 0.0
    %184 = vmatpush.msra.mxu0 0.0
    %185 = vmatpush.msra.mxu0 0.0
    %186 = vmatpush.msra.mxu0 0.0
    %187 = vmatpush.msra.mxu0 0.0
    %188 = vmatpush.msra.mxu0 0.0
    %189 = vmatpush.msra.mxu0 %v165
    %190 = vmatpush.msra.mxu0 %v164
    %191 = vmatpush.msra.mxu0 %v163
    %192 = vmatpush.msra.mxu0 %v162
    %193 = vmatmul.f32.gmra.mxu0 %v175
    %v194 = vpop.f32.mrf.mxu0
    %v195 = vadd.f32 0.0, %v194
    %196 = vdwg.mxu0
    %v197 = vadd.f32 %v173, %v195
    %v198 = vtanh.pop %v197
    %v199 = vxor.u32 %v197, 2147483648
    %v200 = vmul.f32 %v199, 1.442695
    %v201 = vpow.pop %v200
    %v202 = vadd.f32 %v201, 1.0
    %v203 = vrcp.pop %v202
    %v204 = vmul.f32 %v202, %v203
    %v205 = vsub.f32 1.0, %v204
    %v206 = vmul.f32 %v203, %v205
    %v207 = vadd.f32 %v203, %v206
    %vm208 = vweird.f32 %v202
    %vm209 = vweird.f32 %v203
    %vm210 = vmor %vm208, %vm209
    %v211 = vsel %vm210, %v203, %v207
    %v212 = vand.u32 2147483647, %v202
    %vm213 = vcmp.eq.f32.partialorder %v212, 8.507059e+37
    %v214 = vand.u32 %v202, 2147483648
    %v215 = vor.u32 1.1754944e-38, %v214
    %v216 = vsel %vm213, %v215, %v211
    %v217 = vmul.f32 1.0, %v216
    %v218 = vsel %vm170, %v198, %v217
    %220 = vrot.lane.b32.xlu0 %v172, 32
    %v221 = vpop.permute.xlu0 %220
    %v223 = vmul.f32 %v218, %v221
    %225 = vrot.lane.b32.xlu0 %v218, 64
    %v226 = vpop.permute.xlu0 %225
    %v228 = vmul.f32 %v218, %v226
    %230 = vrot.lane.b32.xlu0 %v228, 32
    %v231 = vpop.permute.xlu0 %230
    %v233 = vadd.f32 %v223, %v231
    %v234 = vtanh.pop %v233
    %236 = vrot.lane.b32.xlu0 %v234, 64
    %v237 = vpop.permute.xlu0 %236
    %v239 = vmul.f32 %v218, %v237
    %s240 = scalar_lea.vmem [#allocation4], 8
    %v241 = vld [vmem:[%s240] sm:$0xff]
    %243 = vrot.lane.b32.xlu0 %v239, 32
    %v244 = vpop.permute.xlu0 %243
    %v245 = vsel %vm88, %v244, 0
    %247 = vmatpush.msra.mxu0 0.0
    %248 = vmatpush.msra.mxu0 0.0
    %249 = vmatpush.msra.mxu0 0.0
    %250 = vmatpush.msra.mxu0 0.0
    %251 = vmatpush.msra.mxu0 0.0
    %252 = vmatpush.msra.mxu0 0.0
    %253 = vmatpush.msra.mxu0 0.0
    %254 = vmatpush.msra.mxu0 0.0
    %255 = vmatpush.msra.mxu0 0.0
    %256 = vmatpush.msra.mxu0 0.0
    %257 = vmatpush.msra.mxu0 0.0
    %258 = vmatpush.msra.mxu0 0.0
    %259 = vmatpush.msra.mxu0 %v165
    %260 = vmatpush.msra.mxu0 %v164
    %261 = vmatpush.msra.mxu0 %v163
    %262 = vmatpush.msra.mxu0 %v162
    %263 = vmatmul.f32.gmra.mxu0 %v245
    %v264 = vpop.f32.mrf.mxu0
    %v265 = vadd.f32 0.0, %v264
    %266 = vdwg.mxu0
    %v267 = vadd.f32 %v241, %v265
    %v268 = vtanh.pop %v267
    %v269 = vxor.u32 %v267, 2147483648
    %v270 = vmul.f32 %v269, 1.442695
    %v271 = vpow.pop %v270
    %v272 = vadd.f32 %v271, 1.0
    %v273 = vrcp.pop %v272
    %v274 = vmul.f32 %v272, %v273
    %v275 = vsub.f32 1.0, %v274
    %v276 = vmul.f32 %v273, %v275
    %v277 = vadd.f32 %v273, %v276
    %vm278 = vweird.f32 %v272
    %vm279 = vweird.f32 %v273
    %vm280 = vmor %vm278, %vm279
    %v281 = vsel %vm280, %v273, %v277
    %v282 = vand.u32 2147483647, %v272
    %vm283 = vcmp.eq.f32.partialorder %v282, 8.507059e+37
    %v284 = vand.u32 %v272, 2147483648
    %v285 = vor.u32 1.1754944e-38, %v284
    %v286 = vsel %vm283, %v285, %v281
    %v287 = vmul.f32 1.0, %v286
    %v288 = vsel %vm170, %v268, %v287
    %v289 = vmul.f32 %v288, %v233
    %291 = vrot.lane.b32.xlu0 %v288, 64
    %v292 = vpop.permute.xlu0 %291
    %v294 = vmul.f32 %v288, %v292
    %296 = vrot.lane.b32.xlu0 %v294, 32
    %v297 = vpop.permute.xlu0 %296
    %v299 = vadd.f32 %v289, %v297
    %v300 = vtanh.pop %v299
    %302 = vrot.lane.b32.xlu0 %v300, 64
    %v303 = vpop.permute.xlu0 %302
    %v305 = vmul.f32 %v288, %v303
    %s306 = scalar_lea.vmem [#allocation4], 16
    %v307 = vld [vmem:[%s306] sm:$0xff]
    %309 = vrot.lane.b32.xlu0 %v305, 32
    %v310 = vpop.permute.xlu0 %309
    %v311 = vsel %vm88, %v310, 0
    %313 = vmatpush.msra.mxu0 0.0
    %314 = vmatpush.msra.mxu0 0.0
    %315 = vmatpush.msra.mxu0 0.0
    %316 = vmatpush.msra.mxu0 0.0
    %317 = vmatpush.msra.mxu0 0.0
    %318 = vmatpush.msra.mxu0 0.0
    %319 = vmatpush.msra.mxu0 0.0
    %320 = vmatpush.msra.mxu0 0.0
    %321 = vmatpush.msra.mxu0 0.0
    %322 = vmatpush.msra.mxu0 0.0
    %323 = vmatpush.msra.mxu0 0.0
    %324 = vmatpush.msra.mxu0 0.0
    %325 = vmatpush.msra.mxu0 %v165
    %326 = vmatpush.msra.mxu0 %v164
    %327 = vmatpush.msra.mxu0 %v163
    %328 = vmatpush.msra.mxu0 %v162
    %329 = vmatmul.f32.gmra.mxu0 %v311
    %v330 = vpop.f32.mrf.mxu0
    %v331 = vadd.f32 0.0, %v330
    %332 = vdwg.mxu0
    %v333 = vadd.f32 %v307, %v331
    %v334 = vtanh.pop %v333
    %v335 = vxor.u32 %v333, 2147483648
    %v336 = vmul.f32 %v335, 1.442695
    %v337 = vpow.pop %v336
    %v338 = vadd.f32 %v337, 1.0
    %v339 = vrcp.pop %v338
    %v340 = vmul.f32 %v338, %v339
    %v341 = vsub.f32 1.0, %v340
    %v342 = vmul.f32 %v339, %v341
    %v343 = vadd.f32 %v339, %v342
    %vm344 = vweird.f32 %v338
    %vm345 = vweird.f32 %v339
    %vm346 = vmor %vm344, %vm345
    %v347 = vsel %vm346, %v339, %v343
    %v348 = vand.u32 2147483647, %v338
    %vm349 = vcmp.eq.f32.partialorder %v348, 8.507059e+37
    %v350 = vand.u32 %v338, 2147483648
    %v351 = vor.u32 1.1754944e-38, %v350
    %v352 = vsel %vm349, %v351, %v347
    %v353 = vmul.f32 1.0, %v352
    %v354 = vsel %vm170, %v334, %v353
    %v355 = vmul.f32 %v354, %v299
    %357 = vrot.lane.b32.xlu0 %v354, 64
    %v358 = vpop.permute.xlu0 %357
    %v360 = vmul.f32 %v354, %v358
    %362 = vrot.lane.b32.xlu0 %v360, 32
    %v363 = vpop.permute.xlu0 %362
    %v365 = vadd.f32 %v355, %v363
    %v366 = vtanh.pop %v365
    %368 = vrot.lane.b32.xlu0 %v366, 64
    %v369 = vpop.permute.xlu0 %368
    %v371 = vmul.f32 %v354, %v369
    %s372 = scalar_lea.vmem [#allocation4], 24
    %v373 = vld [vmem:[%s372] sm:$0xff]
    %375 = vrot.lane.b32.xlu0 %v371, 32
    %v376 = vpop.permute.xlu0 %375
    %v377 = vsel %vm88, %v376, 0
    %379 = vmatpush.msra.mxu0 0.0
    %380 = vmatpush.msra.mxu0 0.0
    %381 = vmatpush.msra.mxu0 0.0
    %382 = vmatpush.msra.mxu0 0.0
    %383 = vmatpush.msra.mxu0 0.0
    %384 = vmatpush.msra.mxu0 0.0
    %385 = vmatpush.msra.mxu0 0.0
    %386 = vmatpush.msra.mxu0 0.0
    %387 = vmatpush.msra.mxu0 0.0
    %388 = vmatpush.msra.mxu0 0.0
    %389 = vmatpush.msra.mxu0 0.0
    %390 = vmatpush.msra.mxu0 0.0
    %391 = vmatpush.msra.mxu0 %v165
    %392 = vmatpush.msra.mxu0 %v164
    %393 = vmatpush.msra.mxu0 %v163
    %394 = vmatpush.msra.mxu0 %v162
    %395 = vmatmul.f32.gmra.mxu0 %v377
    %v396 = vpop.f32.mrf.mxu0
    %v397 = vadd.f32 0.0, %v396
    %398 = vdwg.mxu0
    %v399 = vadd.f32 %v373, %v397
    %v400 = vtanh.pop %v399
    %v401 = vxor.u32 %v399, 2147483648
    %v402 = vmul.f32 %v401, 1.442695
    %v403 = vpow.pop %v402
    %v404 = vadd.f32 %v403, 1.0
    %v405 = vrcp.pop %v404
    %v406 = vmul.f32 %v404, %v405
    %v407 = vsub.f32 1.0, %v406
    %v408 = vmul.f32 %v405, %v407
    %v409 = vadd.f32 %v405, %v408
    %vm410 = vweird.f32 %v404
    %vm411 = vweird.f32 %v405
    %vm412 = vmor %vm410, %vm411
    %v413 = vsel %vm412, %v405, %v409
    %v414 = vand.u32 2147483647, %v404
    %vm415 = vcmp.eq.f32.partialorder %v414, 8.507059e+37
    %v416 = vand.u32 %v404, 2147483648
    %v417 = vor.u32 1.1754944e-38, %v416
    %v418 = vsel %vm415, %v417, %v413
    %v419 = vmul.f32 1.0, %v418
    %v420 = vsel %vm170, %v400, %v419
    %v421 = vmul.f32 %v420, %v365
    %423 = vrot.lane.b32.xlu0 %v420, 64
    %v424 = vpop.permute.xlu0 %423
    %v426 = vmul.f32 %v420, %v424
    %428 = vrot.lane.b32.xlu0 %v426, 32
    %v429 = vpop.permute.xlu0 %428
    %v431 = vadd.f32 %v421, %v429
    %v432 = vtanh.pop %v431
    %434 = vrot.lane.b32.xlu0 %v432, 64
    %v435 = vpop.permute.xlu0 %434
    %v437 = vmul.f32 %v420, %v435
    %s438 = scalar_lea.vmem [#allocation4], 32
    %v439 = vld [vmem:[%s438] sm:$0xff]
    %441 = vrot.lane.b32.xlu0 %v437, 32
    %v442 = vpop.permute.xlu0 %441
    %v443 = vsel %vm88, %v442, 0
    %445 = vmatpush.msra.mxu0 0.0
    %446 = vmatpush.msra.mxu0 0.0
    %447 = vmatpush.msra.mxu0 0.0
    %448 = vmatpush.msra.mxu0 0.0
    %449 = vmatpush.msra.mxu0 0.0
    %450 = vmatpush.msra.mxu0 0.0
    %451 = vmatpush.msra.mxu0 0.0
    %452 = vmatpush.msra.mxu0 0.0
    %453 = vmatpush.msra.mxu0 0.0
    %454 = vmatpush.msra.mxu0 0.0
    %455 = vmatpush.msra.mxu0 0.0
    %456 = vmatpush.msra.mxu0 0.0
    %457 = vmatpush.msra.mxu0 %v165
    %458 = vmatpush.msra.mxu0 %v164
    %459 = vmatpush.msra.mxu0 %v163
    %460 = vmatpush.msra.mxu0 %v162
    %461 = vmatmul.f32.gmra.mxu0 %v443
    %v462 = vpop.f32.mrf.mxu0
    %v463 = vadd.f32 0.0, %v462
    %464 = vdwg.mxu0
    %v465 = vadd.f32 %v439, %v463
    %v466 = vtanh.pop %v465
    %v467 = vxor.u32 %v465, 2147483648
    %v468 = vmul.f32 %v467, 1.442695
    %v469 = vpow.pop %v468
    %v470 = vadd.f32 %v469, 1.0
    %v471 = vrcp.pop %v470
    %v472 = vmul.f32 %v470, %v471
    %v473 = vsub.f32 1.0, %v472
    %v474 = vmul.f32 %v471, %v473
    %v475 = vadd.f32 %v471, %v474
    %vm476 = vweird.f32 %v470
    %vm477 = vweird.f32 %v471
    %vm478 = vmor %vm476, %vm477
    %v479 = vsel %vm478, %v471, %v475
    %v480 = vand.u32 2147483647, %v470
    %vm481 = vcmp.eq.f32.partialorder %v480, 8.507059e+37
    %v482 = vand.u32 %v470, 2147483648
    %v483 = vor.u32 1.1754944e-38, %v482
    %v484 = vsel %vm481, %v483, %v479
    %v485 = vmul.f32 1.0, %v484
    %v486 = vsel %vm170, %v466, %v485
    %v487 = vmul.f32 %v486, %v431
    %489 = vrot.lane.b32.xlu0 %v486, 64
    %v490 = vpop.permute.xlu0 %489
    %v492 = vmul.f32 %v486, %v490
    %494 = vrot.lane.b32.xlu0 %v492, 32
    %v495 = vpop.permute.xlu0 %494
    %v497 = vadd.f32 %v487, %v495
    %v498 = vtanh.pop %v497
    %500 = vrot.lane.b32.xlu0 %v498, 64
    %v501 = vpop.permute.xlu0 %500
    %v503 = vmul.f32 %v486, %v501
    %s504 = scalar_lea.vmem [#allocation4], 40
    %v505 = vld [vmem:[%s504] sm:$0xff]
    %507 = vrot.lane.b32.xlu0 %v503, 32
    %v508 = vpop.permute.xlu0 %507
    %v509 = vsel %vm88, %v508, 0
    %511 = vmatpush.msra.mxu0 0.0
    %512 = vmatpush.msra.mxu0 0.0
    %513 = vmatpush.msra.mxu0 0.0
    %514 = vmatpush.msra.mxu0 0.0
    %515 = vmatpush.msra.mxu0 0.0
    %516 = vmatpush.msra.mxu0 0.0
    %517 = vmatpush.msra.mxu0 0.0
    %518 = vmatpush.msra.mxu0 0.0
    %519 = vmatpush.msra.mxu0 0.0
    %520 = vmatpush.msra.mxu0 0.0
    %521 = vmatpush.msra.mxu0 0.0
    %522 = vmatpush.msra.mxu0 0.0
    %523 = vmatpush.msra.mxu0 %v165
    %524 = vmatpush.msra.mxu0 %v164
    %525 = vmatpush.msra.mxu0 %v163
    %526 = vmatpush.msra.mxu0 %v162
    %527 = vmatmul.f32.gmra.mxu0 %v509
    %v528 = vpop.f32.mrf.mxu0
    %v529 = vadd.f32 0.0, %v528
    %530 = vdwg.mxu0
    %v531 = vadd.f32 %v505, %v529
    %v532 = vtanh.pop %v531
    %v533 = vxor.u32 %v531, 2147483648
    %v534 = vmul.f32 %v533, 1.442695
    %v535 = vpow.pop %v534
    %v536 = vadd.f32 %v535, 1.0
    %v537 = vrcp.pop %v536
    %v538 = vmul.f32 %v536, %v537
    %v539 = vsub.f32 1.0, %v538
    %v540 = vmul.f32 %v537, %v539
    %v541 = vadd.f32 %v537, %v540
    %vm542 = vweird.f32 %v536
    %vm543 = vweird.f32 %v537
    %vm544 = vmor %vm542, %vm543
    %v545 = vsel %vm544, %v537, %v541
    %v546 = vand.u32 2147483647, %v536
    %vm547 = vcmp.eq.f32.partialorder %v546, 8.507059e+37
    %v548 = vand.u32 %v536, 2147483648
    %v549 = vor.u32 1.1754944e-38, %v548
    %v550 = vsel %vm547, %v549, %v545
    %v551 = vmul.f32 1.0, %v550
    %v552 = vsel %vm170, %v532, %v551
    %v553 = vmul.f32 %v552, %v497
    %555 = vrot.lane.b32.xlu0 %v552, 64
    %v556 = vpop.permute.xlu0 %555
    %v558 = vmul.f32 %v552, %v556
    %560 = vrot.lane.b32.xlu0 %v558, 32
    %v561 = vpop.permute.xlu0 %560
    %v563 = vadd.f32 %v553, %v561
    %v564 = vtanh.pop %v563
    %566 = vrot.lane.b32.xlu0 %v564, 64
    %v567 = vpop.permute.xlu0 %566
    %v569 = vmul.f32 %v552, %v567
    %s570 = scalar_lea.vmem [#allocation4], 48
    %v571 = vld [vmem:[%s570] sm:$0xff]
    %573 = vrot.lane.b32.xlu0 %v569, 32
    %v574 = vpop.permute.xlu0 %573
    %v575 = vsel %vm88, %v574, 0
    %577 = vmatpush.msra.mxu0 0.0
    %578 = vmatpush.msra.mxu0 0.0
    %579 = vmatpush.msra.mxu0 0.0
    %580 = vmatpush.msra.mxu0 0.0
    %581 = vmatpush.msra.mxu0 0.0
    %582 = vmatpush.msra.mxu0 0.0
    %583 = vmatpush.msra.mxu0 0.0
    %584 = vmatpush.msra.mxu0 0.0
    %585 = vmatpush.msra.mxu0 0.0
    %586 = vmatpush.msra.mxu0 0.0
    %587 = vmatpush.msra.mxu0 0.0
    %588 = vmatpush.msra.mxu0 0.0
    %589 = vmatpush.msra.mxu0 %v165
    %590 = vmatpush.msra.mxu0 %v164
    %591 = vmatpush.msra.mxu0 %v163
    %592 = vmatpush.msra.mxu0 %v162
    %593 = vmatmul.f32.gmra.mxu0 %v575
    %v594 = vpop.f32.mrf.mxu0
    %v595 = vadd.f32 0.0, %v594
    %596 = vdwg.mxu0
    %v597 = vadd.f32 %v571, %v595
    %v598 = vtanh.pop %v597
    %v599 = vxor.u32 %v597, 2147483648
    %v600 = vmul.f32 %v599, 1.442695
    %v601 = vpow.pop %v600
    %v602 = vadd.f32 %v601, 1.0
    %v603 = vrcp.pop %v602
    %v604 = vmul.f32 %v602, %v603
    %v605 = vsub.f32 1.0, %v604
    %v606 = vmul.f32 %v603, %v605
    %v607 = vadd.f32 %v603, %v606
    %vm608 = vweird.f32 %v602
    %vm609 = vweird.f32 %v603
    %vm610 = vmor %vm608, %vm609
    %v611 = vsel %vm610, %v603, %v607
    %v612 = vand.u32 2147483647, %v602
    %vm613 = vcmp.eq.f32.partialorder %v612, 8.507059e+37
    %v614 = vand.u32 %v602, 2147483648
    %v615 = vor.u32 1.1754944e-38, %v614
    %v616 = vsel %vm613, %v615, %v611
    %v617 = vmul.f32 1.0, %v616
    %v618 = vsel %vm170, %v598, %v617
    %v619 = vmul.f32 %v618, %v563
    %621 = vrot.lane.b32.xlu0 %v618, 64
    %v622 = vpop.permute.xlu0 %621
    %v624 = vmul.f32 %v618, %v622
    %626 = vrot.lane.b32.xlu0 %v624, 32
    %v627 = vpop.permute.xlu0 %626
    %v629 = vadd.f32 %v619, %v627
    %v630 = vtanh.pop %v629
    %632 = vrot.lane.b32.xlu0 %v630, 64
    %v633 = vpop.permute.xlu0 %632
    %v635 = vmul.f32 %v618, %v633
    %s636 = scalar_lea.vmem [#allocation4], 56
    %v637 = vld [vmem:[%s636] sm:$0xff]
    %639 = vrot.lane.b32.xlu0 %v635, 32
    %v640 = vpop.permute.xlu0 %639
    %v641 = vsel %vm88, %v640, 0
    %643 = vmatpush.msra.mxu0 0.0
    %644 = vmatpush.msra.mxu0 0.0
    %645 = vmatpush.msra.mxu0 0.0
    %646 = vmatpush.msra.mxu0 0.0
    %647 = vmatpush.msra.mxu0 0.0
    %648 = vmatpush.msra.mxu0 0.0
    %649 = vmatpush.msra.mxu0 0.0
    %650 = vmatpush.msra.mxu0 0.0
    %651 = vmatpush.msra.mxu0 0.0
    %652 = vmatpush.msra.mxu0 0.0
    %653 = vmatpush.msra.mxu0 0.0
    %654 = vmatpush.msra.mxu0 0.0
    %655 = vmatpush.msra.mxu0 %v165
    %656 = vmatpush.msra.mxu0 %v164
    %657 = vmatpush.msra.mxu0 %v163
    %658 = vmatpush.msra.mxu0 %v162
    %659 = vmatmul.f32.gmra.mxu0 %v641
    %v660 = vpop.f32.mrf.mxu0
    %v661 = vadd.f32 0.0, %v660
    %662 = vdwg.mxu0
    %v663 = vadd.f32 %v637, %v661
    %v664 = vtanh.pop %v663
    %v665 = vxor.u32 %v663, 2147483648
    %v666 = vmul.f32 %v665, 1.442695
    %v667 = vpow.pop %v666
    %v668 = vadd.f32 %v667, 1.0
    %v669 = vrcp.pop %v668
    %v670 = vmul.f32 %v668, %v669
    %v671 = vsub.f32 1.0, %v670
    %v672 = vmul.f32 %v669, %v671
    %v673 = vadd.f32 %v669, %v672
    %vm674 = vweird.f32 %v668
    %vm675 = vweird.f32 %v669
    %vm676 = vmor %vm674, %vm675
    %v677 = vsel %vm676, %v669, %v673
    %v678 = vand.u32 2147483647, %v668
    %vm679 = vcmp.eq.f32.partialorder %v678, 8.507059e+37
    %v680 = vand.u32 %v668, 2147483648
    %v681 = vor.u32 1.1754944e-38, %v680
    %v682 = vsel %vm679, %v681, %v677
    %v683 = vmul.f32 1.0, %v682
    %v684 = vsel %vm170, %v664, %v683
    %v685 = vmul.f32 %v684, %v629
    %687 = vrot.lane.b32.xlu0 %v684, 64
    %v688 = vpop.permute.xlu0 %687
    %v690 = vmul.f32 %v684, %v688
    %692 = vrot.lane.b32.xlu0 %v690, 32
    %v693 = vpop.permute.xlu0 %692
    %v695 = vadd.f32 %v685, %v693
    %v696 = vtanh.pop %v695
    %698 = vrot.lane.b32.xlu0 %v696, 64
    %v699 = vpop.permute.xlu0 %698
    %v701 = vmul.f32 %v684, %v699
    %703 = vrot.lane.b32.xlu0 %v701, 32
    %v704 = vpop.permute.xlu0 %703
    %706 = vst.msk [vmem:[#allocation2] sm:$0xff] %vm88, %v704
    %708 = vrot.lane.b32.xlu0 %v695, 96
    %v709 = vpop.permute.xlu0 %708
    %711 = vst.msk [vmem:[#allocation3] sm:$0xff] %vm88, %v709
    // Predicated region
    $region34: #{tpu_custom_call.1} parent=1 // pred_check
      %p712 = pneg %p65
    $region35: #{tpu_custom_call.1} parent=1 // pred_check_branch
      %714 = sbr.rel (%p712) target = $region37
    $region36: #{tpu_custom_call.1} parent=1 // pred_region
      %715 = vst.msk [vmem:[#allocation11] sm:$0xff] %vm88, %v704
    $region37: #{tpu_custom_call.1} parent=1 // pred_fallthru
      _
    // Predicated region
    $region38: #{tpu_custom_call.1} parent=1 // pred_check
      _
    $region39: #{tpu_custom_call.1} parent=1 // pred_check_branch
      %717 = sbr.rel (0) target = $region41
    $region40: #{tpu_custom_call.1} parent=1 // pred_region
      %719 = vsyncadd [#allocation7], 0
      %s721 = sshll.u32 [#allocation11], 4
      %s722 = int_to_ptr.vmem [resolvable:$true] %s721
      %s723 = sshll.u32 %s4, 4
      %s724 = int_to_ptr.hbm [resolvable:$true] %s723
      %726 = dma.vmem_to_hbm [thread:$0]  %s722, 128, %s724, [#allocation7]
    $region41: #{tpu_custom_call.1} parent=1 // pred_fallthru
      _
    // Predicated region
    $region42: #{tpu_custom_call.1} parent=1 // pred_check
      _
    $region43: #{tpu_custom_call.1} parent=1 // pred_check_branch
      %728 = sbr.rel (0) target = $region45
    $region44: #{tpu_custom_call.1} parent=1 // pred_region
      %730 = dma.done [#allocation7], 128
    $region45: #{tpu_custom_call.1} parent=1 // pred_fallthru
      _
    %731 = vsyncpa [#allocation6], 1
    %732 = vsyncpa [#allocation9], 1
    %733 = vsyncpa [#allocation7], 1

</llo_original>
